<compile_context>
chip_gen: v7x
topology: tpu7x:2x2x1
jax: 0.10.0
libtpu: 0.0.40
codegen_flags: <defaults>
</compile_context>

<pallas_src>
import jax
import jax.numpy as jnp
from jax.experimental import pallas as pl
from jax.experimental.pallas import tpu as pltpu


TB_MAX = 1024     # max batch rows per grid step (f32 x tile ~3.7 MiB, x2 buffered)
MIN_STEPS = 4     # keep >= 4 grid steps for large B (>= 2 per TensorCore on v7x)


def _round_up(n, m):
    return ((n + m - 1) // m) * m


def _cdiv(a, b):
    return -(-a // b)


def _discriminator_kernel(x_ref, w1_ref, b1_ref, w2_ref, b2_ref, o_ref):
    tb = x_ref.shape[0]
    # Cast activations to bf16 on the VPU (hides under the x-tile DMA); the MXU
    # matmul accumulates in f32 via preferred_element_type.
    x_bf = x_ref[...].astype(jnp.bfloat16)
    h = jnp.dot(x_bf, w1_ref[...], preferred_element_type=jnp.float32)   # [tb, 128]
    h = h + b1_ref[...]                                   # + [1,128] bias (broadcast)
    # LeakyReLU (PyTorch default negative_slope = 0.01)
    h = jnp.where(h > 0, h, 0.01 * h)
    # Linear(128 -> 1): N=1 matmul wastes the MXU; VPU multiply + XLU lane
    # reduction against the resident [1,128] w2 row instead.
    z = jnp.sum(h * w2_ref[...], axis=-1, keepdims=True) + b2_ref[...]   # [tb, 1]
    # Relayout the lane-sparse [tb,1] column into a lane-dense [8, tb//8] slab so
    # the sigmoid (EUP) and the output store are dense (no masked vst.msk).
    z = z.reshape(8, tb // 8)
    # Sigmoid: exp on the EUP; approximate reciprocal also lands on the EUP slot.
    o_ref[...] = pl.reciprocal(1.0 + jnp.exp(-z), approx=True)


def discriminator_forward(x, w1, b1, w2, b2, *, tb_max=TB_MAX):
    """x: [B, 784] float32 (or bfloat16) -> [B, 1] float32 probability.

    w1: [784, 128], b1: [128], w2: [128, 1], b2: [1]  (transposed vs PyTorch).
    """
    B, K = x.shape
    N1 = w1.shape[1]

    # Small parameters: bf16 weight matrix for the MXU; biases / w2 row stay f32.
    w1_bf = w1.astype(jnp.bfloat16)
    b1_2d = b1.reshape(1, N1).astype(jnp.float32)
    w2_row = w2.reshape(1, N1).astype(jnp.float32)
    b2_2d = b2.reshape(1, 1).astype(jnp.float32)

    # Adaptive batch tile: as big as possible to amortize per-step overhead, but
    # keep >= MIN_STEPS grid steps for large batches (megacore sharding on v7x).
    tb = min(tb_max, _round_up(_cdiv(B, MIN_STEPS), 8))
    tb = max(tb, 8)
    if B < tb:  # only possible for B < 8: pad a handful of rows (negligible)
        x = jnp.pad(x, ((0, tb - B), (0, 0)))
    num_tiles = _cdiv(x.shape[0], tb)   # last x block may be ragged; rows are independent

    out = pl.pallas_call(
        _discriminator_kernel,
        out_shape=jax.ShapeDtypeStruct((num_tiles * 8, tb // 8), jnp.float32),
        grid=(num_tiles,),
        in_specs=[
            pl.BlockSpec((tb, K), lambda i: (i, 0)),      # x tile, pipelined over batch
            pl.BlockSpec((K, N1), lambda i: (0, 0)),      # w1 (bf16) resident in VMEM
            pl.BlockSpec((1, N1), lambda i: (0, 0)),      # b1 resident
            pl.BlockSpec((1, N1), lambda i: (0, 0)),      # w2 row resident
            pl.BlockSpec((1, 1), lambda i: (0, 0)),       # b2 resident
        ],
        out_specs=pl.BlockSpec((8, tb // 8), lambda i: (i, 0)),   # lane-dense slab per step
        compiler_params=pltpu.CompilerParams(
            dimension_semantics=("parallel",),
            vmem_limit_bytes=32 * 1024 * 1024,  # <= physical VMEM on v5e/v6e/v7x
        ),
    )(x, w1_bf, b1_2d, w2_row, b2_2d)

    # (num_tiles*8, tb//8) row-major flattens exactly in batch order.
    return out.reshape(-1)[:B].reshape(B, 1)


def init_params(key):
    """Deterministic synthetic init matching the PyTorch module's shapes."""
    k1, k2, k3, k4 = jax.random.split(key, 4)
    in1, out1 = 28 * 28, 128
    in2, out2 = 128, 1
    bnd1 = 1.0 / jnp.sqrt(in1)
    bnd2 = 1.0 / jnp.sqrt(in2)
    w1 = jax.random.uniform(k1, (in1, out1), jnp.float32, -bnd1, bnd1)
    b1 = jax.random.uniform(k2, (out1,), jnp.float32, -bnd1, bnd1)
    w2 = jax.random.uniform(k3, (in2, out2), jnp.float32, -bnd2, bnd2)
    b2 = jax.random.uniform(k4, (out2,), jnp.float32, -bnd2, bnd2)
    return w1, b1, w2, b2


def _reference_forward(x, w1, b1, w2, b2):
    h = x @ w1 + b1
    h = jnp.where(h > 0, h, 0.01 * h)
    z = h @ w2 + b2
    return jax.nn.sigmoid(z)


if __name__ == "__main__":
    key = jax.random.PRNGKey(0)
    kp, kx1, kx2 = jax.random.split(key, 3)
    w1, b1, w2, b2 = init_params(kp)

    # Small batch: single tile (tb == B == 8).
    x_small = jax.random.normal(kx1, (8, 28 * 28), jnp.float32)
    out_small = jax.block_until_ready(discriminator_forward(x_small, w1, b1, w2, b2))
    ref_small = _reference_forward(x_small, w1, b1, w2, b2)
    assert out_small.shape == (8, 1)
    # bf16 activations + approx reciprocal -> compare vs f32 ref with loose tol.
    assert jnp.allclose(out_small, ref_small, atol=5e-3, rtol=1e-3)

    # Larger ragged batch: 4 pipelined grid steps of 256 rows + ragged tail block.
    x_big = jax.random.normal(kx2, (1000, 28 * 28), jnp.float32)
    out_big = jax.block_until_ready(discriminator_forward(x_big, w1, b1, w2, b2))
    ref_big = _reference_forward(x_big, w1, b1, w2, b2)
    assert out_big.shape == (1000, 1)
    assert jnp.allclose(out_big, ref_big, atol=5e-3, rtol=1e-3)

    print("KERNEL_OK")
</pallas_src>

<mosaic_0001>
module attributes {stable_mosaic.version = 11 : i64} {
  func.func @_discriminator_kernel(%arg0: i32, %arg1: memref<8x784xf32, #tpu.memory_space<vmem>>, %arg2: memref<784x128xbf16, #tpu.memory_space<vmem>>, %arg3: memref<1x128xf32, #tpu.memory_space<vmem>>, %arg4: memref<1x128xf32, #tpu.memory_space<vmem>>, %arg5: memref<1x1xf32, #tpu.memory_space<vmem>>, %arg6: memref<8x1xf32, #tpu.memory_space<vmem>>) attributes {dimension_semantics = [#tpu.dimension_semantics<parallel>], iteration_bounds = array<i64: 1>, scalar_prefetch = 0 : i64, scratch_operands = 0 : i64, tpu.core_type = #tpu.core_type<tc>, window_params = [{transform_indices = @transform_0, window_bounds = array<i64: 8, 784>}, {pipeline_mode = #tpu.pipeline_mode<synchronous>, transform_indices = @transform_1, window_bounds = array<i64: 784, 128>}, {pipeline_mode = #tpu.pipeline_mode<synchronous>, transform_indices = @transform_2, window_bounds = array<i64: 1, 128>}, {pipeline_mode = #tpu.pipeline_mode<synchronous>, transform_indices = @transform_3, window_bounds = array<i64: 1, 128>}, {pipeline_mode = #tpu.pipeline_mode<synchronous>, transform_indices = @transform_4, window_bounds = array<i64: 1, 1>}, {transform_indices = @transform_5, window_bounds = array<i64: 8, 1>}]} {
    %c0 = arith.constant 0 : index
    %c0_0 = arith.constant 0 : index
    %0 = vector.load %arg1[%c0, %c0_0] : memref<8x784xf32, #tpu.memory_space<vmem>>, vector<8x784xf32>
    %1 = arith.truncf %0 : vector<8x784xf32> to vector<8x784xbf16>
    %c0_1 = arith.constant 0 : index
    %c0_2 = arith.constant 0 : index
    %2 = vector.load %arg2[%c0_1, %c0_2] : memref<784x128xbf16, #tpu.memory_space<vmem>>, vector<784x128xbf16>
    %cst = arith.constant dense<0.000000e+00> : vector<8x128xf32>
    %3 = tpu.matmul %1, %2, %cst {dimension_numbers = #tpu.dot_dimension_numbers<[1], [0], [0], [1], [0, 0, 1, 1], [], []>} : vector<8x784xbf16>, vector<784x128xbf16>, vector<8x128xf32> -> vector<8x128xf32>
    %c0_3 = arith.constant 0 : index
    %c0_4 = arith.constant 0 : index
    %4 = vector.load %arg3[%c0_3, %c0_4] : memref<1x128xf32, #tpu.memory_space<vmem>>, vector<1x128xf32>
    %5 = vector.broadcast %4 : vector<1x128xf32> to vector<8x128xf32>
    %6 = arith.addf %3, %5 : vector<8x128xf32>
    %cst_5 = arith.constant 0.000000e+00 : f32
    %7 = vector.broadcast %cst_5 : f32 to vector<8x128xf32>
    %8 = arith.cmpf ogt, %6, %7 : vector<8x128xf32>
    %cst_6 = arith.constant 0.00999999977 : f32
    %9 = vector.broadcast %cst_6 : f32 to vector<8x128xf32>
    %10 = arith.mulf %9, %6 : vector<8x128xf32>
    %11 = arith.select %8, %6, %10 : vector<8x128xi1>, vector<8x128xf32>
    %c0_7 = arith.constant 0 : index
    %c0_8 = arith.constant 0 : index
    %12 = vector.load %arg4[%c0_7, %c0_8] : memref<1x128xf32, #tpu.memory_space<vmem>>, vector<1x128xf32>
    %13 = vector.broadcast %12 : vector<1x128xf32> to vector<8x128xf32>
    %14 = arith.mulf %11, %13 : vector<8x128xf32>
    %cst_9 = arith.constant dense<0.000000e+00> : vector<8xf32>
    %15 = vector.multi_reduction <add>, %14, %cst_9 [1] : vector<8x128xf32> to vector<8xf32>
    %16 = vector.shape_cast %15 : vector<8xf32> to vector<8x1xf32>
    %c0_10 = arith.constant 0 : index
    %c0_11 = arith.constant 0 : index
    %17 = vector.load %arg5[%c0_10, %c0_11] : memref<1x1xf32, #tpu.memory_space<vmem>>, vector<1x1xf32>
    %18 = vector.broadcast %17 : vector<1x1xf32> to vector<8x1xf32>
    %19 = arith.addf %16, %18 : vector<8x1xf32>
    %cst_12 = arith.constant 0.000000e+00 : f32
    %20 = vector.broadcast %cst_12 : f32 to vector<8x1xf32>
    %21 = arith.subf %20, %19 : vector<8x1xf32>
    %22 = math.exp %21 : vector<8x1xf32>
    %cst_13 = arith.constant 1.000000e+00 : f32
    %23 = vector.broadcast %cst_13 : f32 to vector<8x1xf32>
    %24 = arith.addf %23, %22 : vector<8x1xf32>
    %25 = tpu.reciprocal %24 {approx = true} : vector<8x1xf32> -> vector<8x1xf32>
    %c0_14 = arith.constant 0 : index
    %c0_15 = arith.constant 0 : index
    %26 = vector.load %arg6[%c0_14, %c0_15] : memref<8x1xf32, #tpu.memory_space<vmem>>, vector<8x1xf32>
    tpu.vector_store %arg6[%c0_14, %c0_15], %25 {strides = array<i32>} : memref<8x1xf32, #tpu.memory_space<vmem>>, vector<8x1xf32>,
    return
  }
  func.func @transform_0(%arg0: i32) -> (i32, i32) {
    %c0_i32 = arith.constant 0 : i32
    %c0_i32_0 = arith.constant 0 : i32
    return %arg0, %c0_i32 : i32, i32
  }
  func.func @transform_1(%arg0: i32) -> (i32, i32) {
    %c0_i32 = arith.constant 0 : i32
    %c0_i32_0 = arith.constant 0 : i32
    %c0_i32_1 = arith.constant 0 : i32
    return %c0_i32, %c0_i32_0 : i32, i32
  }
  func.func @transform_2(%arg0: i32) -> (i32, i32) {
    %c0_i32 = arith.constant 0 : i32
    %c0_i32_0 = arith.constant 0 : i32
    %c0_i32_1 = arith.constant 0 : i32
    return %c0_i32, %c0_i32_0 : i32, i32
  }
  func.func @transform_3(%arg0: i32) -> (i32, i32) {
    %c0_i32 = arith.constant 0 : i32
    %c0_i32_0 = arith.constant 0 : i32
    %c0_i32_1 = arith.constant 0 : i32
    return %c0_i32, %c0_i32_0 : i32, i32
  }
  func.func @transform_4(%arg0: i32) -> (i32, i32) {
    %c0_i32 = arith.constant 0 : i32
    %c0_i32_0 = arith.constant 0 : i32
    %c0_i32_1 = arith.constant 0 : i32
    return %c0_i32, %c0_i32_0 : i32, i32
  }
  func.func @transform_5(%arg0: i32) -> (i32, i32) {
    %c0_i32 = arith.constant 0 : i32
    %c0_i32_0 = arith.constant 0 : i32
    return %arg0, %c0_i32 : i32, i32
  }
}

</mosaic_0001>

<llo_original>
// kernel: tpu_custom_call.1
$region0: #{tpu_custom_call.1}
  #allocation0 [shape = 'u32[]', space=smem, size = 0x4, offset = 0x4, fixed_abs, tag = 'smem constant byte address 0x4 - core index']
  #allocation1 [shape = 'u32[144,128]{1,0:T(1,128)}', space=vmem, size = 0x12000, scoped, tag = 'internal scratch']
  #allocation2 [shape = 'f32[1,1]{1,0:T(1,128)S(1)}', space=vmem, size = 0x200, scoped, tag = 'scoped memory for tpu_custom_call.1']
  %s0 = inlined_call_operand.hbm [shape: f32[8,784], index: 0, kind: input, shape index: {}]
  %s1 = inlined_call_operand.hbm [shape: bf16[784,128], index: 1, kind: input, shape index: {}]
  %s2 = inlined_call_operand.vmem [shape: f32[1,128], index: 2, kind: input, shape index: {}]
  %s3 = inlined_call_operand.vmem [shape: f32[1,128], index: 3, kind: input, shape index: {}]
  %s4 = inlined_call_operand.<no memory space> [shape: f32[1,1], index: 4, kind: input, shape index: {}]
  %s5 = inlined_call_operand.vmem [shape: f32[8,1], index: 5, kind: output, shape index: {}]
  %s6 = sld [smem:[#allocation0]]
  $region38: #{tpu_custom_call.1} parent=0
    _
  %s8 = ssub.s32 1, %s6
  %s9 = scalar_select 0, %s8, %s6
  %v10 = vstv %s4
  %11 = vst [vmem:[#allocation2] sm:$0x1] %v10
  $region1: #{tpu_custom_call.1} parent=0
    #allocation3 [shape = 'u8[28672]{0}', space=vmem, size = 0x7000, scoped, tag = 'input window, operand 0, single buffered']
    #allocation4 [shape = 's32[1]{0}', space=sflag, size = 0x4, scoped, tag = 'scoped memory for tpu_custom_call.1']
    #allocation5 [shape = 'u8[200704]{0}', space=vmem, size = 0x31000, scoped, tag = 'input window, operand 1, single buffered']
    #allocation6 [shape = 's32[1]{0}', space=sflag, size = 0x4, scoped, tag = 'scoped memory for tpu_custom_call.1']
    %12 = vsyncpa [#allocation4], 0
    %13 = vsyncpa [#allocation6], 0
    // Predicated region
    $region2: #{tpu_custom_call.1} parent=1 // pred_check
      _
    $region3: #{tpu_custom_call.1} parent=1 // pred_check_branch
      %15 = sbr.rel (0) target = $region5
    $region4: #{tpu_custom_call.1} parent=1 // pred_region
      %s17 = ssub.s32 896, 896
      %18 = vsyncadd [#allocation4], %s17
      %s20 = sshll.u32 [#allocation3], 4
      %s21 = int_to_ptr.vmem [resolvable:$true] %s20
      %23 = dma.hbm_to_vmem [thread:$0]  %s0, 896, %s21, [#allocation4]
    $region5: #{tpu_custom_call.1} parent=1 // pred_fallthru
      _
    // Predicated region
    $region6: #{tpu_custom_call.1} parent=1 // pred_check
      _
    $region7: #{tpu_custom_call.1} parent=1 // pred_check_branch
      %25 = sbr.rel (0) target = $region9
    $region8: #{tpu_custom_call.1} parent=1 // pred_region
      %s27 = ssub.s32 6272, 6272
      %28 = vsyncadd [#allocation6], %s27
      %s29 = sshll.u32 [#allocation5], 4
      %s30 = int_to_ptr.vmem [resolvable:$true] %s29
      %35 = dma.hbm_to_vmem [thread:$0]  %s1, 6272, %s30, [#allocation6], 64, 64, 4
    $region9: #{tpu_custom_call.1} parent=1 // pred_fallthru
      _
    // Predicated region
    $region10: #{tpu_custom_call.1} parent=1 // pred_check
      _
    $region11: #{tpu_custom_call.1} parent=1 // pred_check_branch
      %37 = sbr.rel (0) target = $region13
    $region12: #{tpu_custom_call.1} parent=1 // pred_region
      _
    $region13: #{tpu_custom_call.1} parent=1 // pred_fallthru
      _
    // Predicated region
    $region14: #{tpu_custom_call.1} parent=1 // pred_check
      _
    $region15: #{tpu_custom_call.1} parent=1 // pred_check_branch
      %39 = sbr.rel (0) target = $region17
    $region16: #{tpu_custom_call.1} parent=1 // pred_region
      _
    $region17: #{tpu_custom_call.1} parent=1 // pred_fallthru
      _
    // Predicated region
    $region18: #{tpu_custom_call.1} parent=1 // pred_check
      _
    $region19: #{tpu_custom_call.1} parent=1 // pred_check_branch
      %41 = sbr.rel (0) target = $region21
    $region20: #{tpu_custom_call.1} parent=1 // pred_region
      _
    $region21: #{tpu_custom_call.1} parent=1 // pred_fallthru
      _
    // Predicated region
    $region22: #{tpu_custom_call.1} parent=1 // pred_check
      _
    $region23: #{tpu_custom_call.1} parent=1 // pred_check_branch
      %43 = sbr.rel (0) target = $region25
    $region24: #{tpu_custom_call.1} parent=1 // pred_region
      %44 = dma.done [#allocation4], 896
    $region25: #{tpu_custom_call.1} parent=1 // pred_fallthru
      _
    // Predicated region
    $region26: #{tpu_custom_call.1} parent=1 // pred_check
      _
    $region27: #{tpu_custom_call.1} parent=1 // pred_check_branch
      %46 = sbr.rel (0) target = $region29
    $region28: #{tpu_custom_call.1} parent=1 // pred_region
      %47 = dma.done [#allocation6], 6272
    $region29: #{tpu_custom_call.1} parent=1 // pred_fallthru
      _
    %v49 = vld [vmem:[#allocation3] sm:$0xff]
    %v50 = vld [vmem:[#allocation3 + $0x8] sm:$0xff]
    %v51 = vld [vmem:[#allocation3 + $0x10] sm:$0xff]
    %v52 = vld [vmem:[#allocation3 + $0x18] sm:$0xff]
    %v53 = vld [vmem:[#allocation3 + $0x20] sm:$0xff]
    %v54 = vld [vmem:[#allocation3 + $0x28] sm:$0xff]
    %v55 = vld [vmem:[#allocation3 + $0x30] sm:$0xff]
    %v56 = vpack.c.bf16 %v49, %v49
    %v57 = vpack.c.bf16 %v50, %v50
    %v58 = vpack.c.bf16 %v51, %v51
    %v59 = vpack.c.bf16 %v52, %v52
    %v60 = vpack.c.bf16 %v53, %v53
    %v61 = vpack.c.bf16 %v54, %v54
    %v62 = vpack.c.bf16 %v55, %v55
    %v63 = vld [vmem:[#allocation5] sm:$0xf]
    %v64 = vld [vmem:[#allocation5 + $0x4] sm:$0xf]
    %v65 = vld [vmem:[#allocation5 + $0x8] sm:$0xf]
    %v66 = vld [vmem:[#allocation5 + $0xc] sm:$0xf]
    %v67 = vld [vmem:[#allocation5 + $0x10] sm:$0xf]
    %v68 = vld [vmem:[#allocation5 + $0x14] sm:$0xf]
    %v69 = vld [vmem:[#allocation5 + $0x18] sm:$0xf]
    %v70 = vld [vmem:[#allocation5 + $0x1c] sm:$0xf]
    %v71 = vld [vmem:[#allocation5 + $0x20] sm:$0xf]
    %v72 = vld [vmem:[#allocation5 + $0x24] sm:$0xf]
    %v73 = vld [vmem:[#allocation5 + $0x28] sm:$0xf]
    %v74 = vld [vmem:[#allocation5 + $0x2c] sm:$0xf]
    %v75 = vld [vmem:[#allocation5 + $0x30] sm:$0xf]
    %v76 = vld [vmem:[#allocation5 + $0x34] sm:$0xf]
    %v77 = vld [vmem:[#allocation5 + $0x38] sm:$0xf]
    %v78 = vld [vmem:[#allocation5 + $0x3c] sm:$0xf]
    %v79 = vld [vmem:[#allocation5 + $0x40] sm:$0xf]
    %v80 = vld [vmem:[#allocation5 + $0x44] sm:$0xf]
    %v81 = vld [vmem:[#allocation5 + $0x48] sm:$0xf]
    %v82 = vld [vmem:[#allocation5 + $0x4c] sm:$0xf]
    %v83 = vld [vmem:[#allocation5 + $0x50] sm:$0xf]
    %v84 = vld [vmem:[#allocation5 + $0x54] sm:$0xf]
    %v85 = vld [vmem:[#allocation5 + $0x58] sm:$0xf]
    %v86 = vld [vmem:[#allocation5 + $0x5c] sm:$0xf]
    %v87 = vld [vmem:[#allocation5 + $0x60] sm:$0xf]
    %v88 = vld [vmem:[#allocation5 + $0x64] sm:$0xf]
    %v89 = vld [vmem:[#allocation5 + $0x68] sm:$0xf]
    %v90 = vld [vmem:[#allocation5 + $0x6c] sm:$0xf]
    %v91 = vld [vmem:[#allocation5 + $0x70] sm:$0xf]
    %v92 = vld [vmem:[#allocation5 + $0x74] sm:$0xf]
    %v93 = vld [vmem:[#allocation5 + $0x78] sm:$0xf]
    %v94 = vld [vmem:[#allocation5 + $0x7c] sm:$0xf]
    %v95 = vld [vmem:[#allocation5 + $0x80] sm:$0xf]
    %v96 = vld [vmem:[#allocation5 + $0x84] sm:$0xf]
    %v97 = vld [vmem:[#allocation5 + $0x88] sm:$0xf]
    %v98 = vld [vmem:[#allocation5 + $0x8c] sm:$0xf]
    %v99 = vld [vmem:[#allocation5 + $0x90] sm:$0xf]
    %v100 = vld [vmem:[#allocation5 + $0x94] sm:$0xf]
    %v101 = vld [vmem:[#allocation5 + $0x98] sm:$0xf]
    %v102 = vld [vmem:[#allocation5 + $0x9c] sm:$0xf]
    %v103 = vld [vmem:[#allocation5 + $0xa0] sm:$0xf]
    %v104 = vld [vmem:[#allocation5 + $0xa4] sm:$0xf]
    %v105 = vld [vmem:[#allocation5 + $0xa8] sm:$0xf]
    %v106 = vld [vmem:[#allocation5 + $0xac] sm:$0xf]
    %v107 = vld [vmem:[#allocation5 + $0xb0] sm:$0xf]
    %v108 = vld [vmem:[#allocation5 + $0xb4] sm:$0xf]
    %v109 = vld [vmem:[#allocation5 + $0xb8] sm:$0xf]
    %v110 = vld [vmem:[#allocation5 + $0xbc] sm:$0xf]
    %v111 = vld [vmem:[#allocation5 + $0xc0] sm:$0xf]
    %v112 = vld [vmem:[#allocation5 + $0xc4] sm:$0xf]
    %v113 = vld [vmem:[#allocation5 + $0xc8] sm:$0xf]
    %v114 = vld [vmem:[#allocation5 + $0xcc] sm:$0xf]
    %v115 = vld [vmem:[#allocation5 + $0xd0] sm:$0xf]
    %v116 = vld [vmem:[#allocation5 + $0xd4] sm:$0xf]
    %v117 = vld [vmem:[#allocation5 + $0xd8] sm:$0xf]
    %v118 = vld [vmem:[#allocation5 + $0xdc] sm:$0xf]
    %v119 = vld [vmem:[#allocation5 + $0xe0] sm:$0xf]
    %v120 = vld [vmem:[#allocation5 + $0xe4] sm:$0xf]
    %v121 = vld [vmem:[#allocation5 + $0xe8] sm:$0xf]
    %v122 = vld [vmem:[#allocation5 + $0xec] sm:$0xf]
    %v123 = vld [vmem:[#allocation5 + $0xf0] sm:$0xf]
    %v124 = vld [vmem:[#allocation5 + $0xf4] sm:$0xf]
    %v125 = vld [vmem:[#allocation5 + $0xf8] sm:$0xf]
    %v126 = vld [vmem:[#allocation5 + $0xfc] sm:$0xf]
    %v127 = vld [vmem:[#allocation5 + $0x100] sm:$0xf]
    %v128 = vld [vmem:[#allocation5 + $0x104] sm:$0xf]
    %v129 = vld [vmem:[#allocation5 + $0x108] sm:$0xf]
    %v130 = vld [vmem:[#allocation5 + $0x10c] sm:$0xf]
    %v131 = vld [vmem:[#allocation5 + $0x110] sm:$0xf]
    %v132 = vld [vmem:[#allocation5 + $0x114] sm:$0xf]
    %v133 = vld [vmem:[#allocation5 + $0x118] sm:$0xf]
    %v134 = vld [vmem:[#allocation5 + $0x11c] sm:$0xf]
    %v135 = vld [vmem:[#allocation5 + $0x120] sm:$0xf]
    %v136 = vld [vmem:[#allocation5 + $0x124] sm:$0xf]
    %v137 = vld [vmem:[#allocation5 + $0x128] sm:$0xf]
    %v138 = vld [vmem:[#allocation5 + $0x12c] sm:$0xf]
    %v139 = vld [vmem:[#allocation5 + $0x130] sm:$0xf]
    %v140 = vld [vmem:[#allocation5 + $0x134] sm:$0xf]
    %v141 = vld [vmem:[#allocation5 + $0x138] sm:$0xf]
    %v142 = vld [vmem:[#allocation5 + $0x13c] sm:$0xf]
    %v143 = vld [vmem:[#allocation5 + $0x140] sm:$0xf]
    %v144 = vld [vmem:[#allocation5 + $0x144] sm:$0xf]
    %v145 = vld [vmem:[#allocation5 + $0x148] sm:$0xf]
    %v146 = vld [vmem:[#allocation5 + $0x14c] sm:$0xf]
    %v147 = vld [vmem:[#allocation5 + $0x150] sm:$0xf]
    %v148 = vld [vmem:[#allocation5 + $0x154] sm:$0xf]
    %v149 = vld [vmem:[#allocation5 + $0x158] sm:$0xf]
    %v150 = vld [vmem:[#allocation5 + $0x15c] sm:$0xf]
    %v151 = vld [vmem:[#allocation5 + $0x160] sm:$0xf]
    %v152 = vld [vmem:[#allocation5 + $0x164] sm:$0xf]
    %v153 = vld [vmem:[#allocation5 + $0x168] sm:$0xf]
    %v154 = vld [vmem:[#allocation5 + $0x16c] sm:$0xf]
    %v155 = vld [vmem:[#allocation5 + $0x170] sm:$0xf]
    %v156 = vld [vmem:[#allocation5 + $0x174] sm:$0xf]
    %v157 = vld [vmem:[#allocation5 + $0x178] sm:$0xf]
    %v158 = vld [vmem:[#allocation5 + $0x17c] sm:$0xf]
    %v159 = vld [vmem:[#allocation5 + $0x180] sm:$0xf]
    %v160 = vld [vmem:[#allocation5 + $0x184] sm:$0xf]
    %v161 = vld [vmem:[%s2] sm:$0x1]
    %v163 = vlaneseq
    %v164 = vshrl.u32 %v163, 7
    %v165 = vsub.s32 0, %v164
    %v166 = vrot.slane %v161, %v165
    %v266 = vunpack.c.l.b16 %v63
    %v267 = vunpack.c.l.b16 %v64
    %v268 = vunpack.c.l.b16 %v65
    %v269 = vunpack.c.l.b16 %v66
    %v270 = vunpack.c.l.b16 %v67
    %v271 = vunpack.c.l.b16 %v68
    %v272 = vunpack.c.l.b16 %v69
    %v273 = vunpack.c.l.b16 %v70
    %v274 = vunpack.c.l.b16 %v71
    %v275 = vunpack.c.l.b16 %v72
    %v276 = vunpack.c.l.b16 %v73
    %v277 = vunpack.c.l.b16 %v74
    %v278 = vunpack.c.l.b16 %v75
    %v279 = vunpack.c.l.b16 %v76
    %v280 = vunpack.c.l.b16 %v77
    %v281 = vunpack.c.l.b16 %v78
    %v282 = vunpack.c.l.b16 %v79
    %v283 = vunpack.c.l.b16 %v80
    %v284 = vunpack.c.l.b16 %v81
    %v285 = vunpack.c.l.b16 %v82
    %v286 = vunpack.c.l.b16 %v83
    %v287 = vunpack.c.l.b16 %v84
    %v288 = vunpack.c.l.b16 %v85
    %v289 = vunpack.c.l.b16 %v86
    %v290 = vunpack.c.l.b16 %v87
    %v291 = vunpack.c.l.b16 %v88
    %v292 = vunpack.c.l.b16 %v89
    %v293 = vunpack.c.l.b16 %v90
    %v294 = vunpack.c.l.b16 %v91
    %v295 = vunpack.c.l.b16 %v92
    %v296 = vunpack.c.l.b16 %v93
    %v297 = vunpack.c.l.b16 %v94
    %v298 = vunpack.c.l.b16 %v95
    %v299 = vunpack.c.l.b16 %v96
    %v300 = vunpack.c.l.b16 %v97
    %v301 = vunpack.c.l.b16 %v98
    %v302 = vunpack.c.l.b16 %v99
    %v303 = vunpack.c.l.b16 %v100
    %v304 = vunpack.c.l.b16 %v101
    %v305 = vunpack.c.l.b16 %v102
    %v306 = vunpack.c.l.b16 %v103
    %v307 = vunpack.c.l.b16 %v104
    %v308 = vunpack.c.l.b16 %v105
    %v309 = vunpack.c.l.b16 %v106
    %v310 = vunpack.c.l.b16 %v107
    %v311 = vunpack.c.l.b16 %v108
    %v312 = vunpack.c.l.b16 %v109
    %v313 = vunpack.c.l.b16 %v110
    %v314 = vunpack.c.l.b16 %v111
    %v315 = vunpack.c.l.b16 %v112
    %v316 = vunpack.c.l.b16 %v113
    %v317 = vunpack.c.l.b16 %v114
    %v318 = vunpack.c.l.b16 %v115
    %v319 = vunpack.c.l.b16 %v116
    %v320 = vunpack.c.l.b16 %v117
    %v321 = vunpack.c.l.b16 %v118
    %v322 = vunpack.c.l.b16 %v119
    %v323 = vunpack.c.l.b16 %v120
    %v324 = vunpack.c.l.b16 %v121
    %v325 = vunpack.c.l.b16 %v122
    %v326 = vunpack.c.l.b16 %v123
    %v327 = vunpack.c.l.b16 %v124
    %v328 = vunpack.c.l.b16 %v125
    %v329 = vunpack.c.l.b16 %v126
    %v330 = vunpack.c.l.b16 %v127
    %v331 = vunpack.c.l.b16 %v128
    %v332 = vunpack.c.l.b16 %v129
    %v333 = vunpack.c.l.b16 %v130
    %v334 = vunpack.c.l.b16 %v131
    %v335 = vunpack.c.l.b16 %v132
    %v336 = vunpack.c.l.b16 %v133
    %v337 = vunpack.c.l.b16 %v134
    %v338 = vunpack.c.l.b16 %v135
    %v339 = vunpack.c.l.b16 %v136
    %v340 = vunpack.c.l.b16 %v137
    %v341 = vunpack.c.l.b16 %v138
    %v342 = vunpack.c.l.b16 %v139
    %v343 = vunpack.c.l.b16 %v140
    %v344 = vunpack.c.l.b16 %v141
    %v345 = vunpack.c.l.b16 %v142
    %v346 = vunpack.c.l.b16 %v143
    %v347 = vunpack.c.l.b16 %v144
    %v348 = vunpack.c.l.b16 %v145
    %v349 = vunpack.c.l.b16 %v146
    %v350 = vunpack.c.l.b16 %v147
    %v351 = vunpack.c.l.b16 %v148
    %v352 = vunpack.c.l.b16 %v149
    %v353 = vunpack.c.l.b16 %v150
    %v354 = vunpack.c.l.b16 %v151
    %v355 = vunpack.c.l.b16 %v152
    %v356 = vunpack.c.l.b16 %v153
    %v357 = vunpack.c.l.b16 %v154
    %v358 = vunpack.c.l.b16 %v155
    %v359 = vunpack.c.l.b16 %v156
    %v360 = vunpack.c.l.b16 %v157
    %v361 = vunpack.c.l.b16 %v158
    %v362 = vunpack.c.l.b16 %v159
    %v363 = vunpack.c.l.b16 %v160
    %v364 = vpack.c.b16 %v267, %v266
    %v365 = vpack.c.b16 %v269, %v268
    %v366 = vpack.c.b16 %v271, %v270
    %v367 = vpack.c.b16 %v273, %v272
    %v368 = vpack.c.b16 %v275, %v274
    %v369 = vpack.c.b16 %v277, %v276
    %v370 = vpack.c.b16 %v279, %v278
    %v371 = vpack.c.b16 %v281, %v280
    %v372 = vpack.c.b16 %v283, %v282
    %v373 = vpack.c.b16 %v285, %v284
    %v374 = vpack.c.b16 %v287, %v286
    %v375 = vpack.c.b16 %v289, %v288
    %v376 = vpack.c.b16 %v291, %v290
    %v377 = vpack.c.b16 %v293, %v292
    %v378 = vpack.c.b16 %v295, %v294
    %v379 = vpack.c.b16 %v297, %v296
    %v380 = vpack.c.b16 %v299, %v298
    %v381 = vpack.c.b16 %v301, %v300
    %v382 = vpack.c.b16 %v303, %v302
    %v383 = vpack.c.b16 %v305, %v304
    %v384 = vpack.c.b16 %v307, %v306
    %v385 = vpack.c.b16 %v309, %v308
    %v386 = vpack.c.b16 %v311, %v310
    %v387 = vpack.c.b16 %v313, %v312
    %v388 = vpack.c.b16 %v315, %v314
    %v389 = vpack.c.b16 %v317, %v316
    %v390 = vpack.c.b16 %v319, %v318
    %v391 = vpack.c.b16 %v321, %v320
    %v392 = vpack.c.b16 %v323, %v322
    %v393 = vpack.c.b16 %v325, %v324
    %v394 = vpack.c.b16 %v327, %v326
    %v395 = vpack.c.b16 %v329, %v328
    %v396 = vpack.c.b16 %v331, %v330
    %v397 = vpack.c.b16 %v333, %v332
    %v398 = vpack.c.b16 %v335, %v334
    %v399 = vpack.c.b16 %v337, %v336
    %v400 = vpack.c.b16 %v339, %v338
    %v401 = vpack.c.b16 %v341, %v340
    %v402 = vpack.c.b16 %v343, %v342
    %v403 = vpack.c.b16 %v345, %v344
    %v404 = vpack.c.b16 %v347, %v346
    %v405 = vpack.c.b16 %v349, %v348
    %v406 = vpack.c.b16 %v351, %v350
    %v407 = vpack.c.b16 %v353, %v352
    %v408 = vpack.c.b16 %v355, %v354
    %v409 = vpack.c.b16 %v357, %v356
    %v410 = vpack.c.b16 %v359, %v358
    %v411 = vpack.c.b16 %v361, %v360
    %v412 = vpack.c.b16 %v363, %v362
    %vm462 = vcmask 130048
    %v464 = vsel %vm462, %v62, 0
    %466 = vmatprep.subr.bf16.mxu0 0
    %467 = vmatpush1.bf16.msra.mxu0 %v364
    %468 = vmatprep.subr.bf16.mxu0 0
    %469 = vmatpush1.bf16.msra.mxu0 %v365
    %470 = vmatprep.subr.bf16.mxu0 0
    %471 = vmatpush1.bf16.msra.mxu0 %v366
    %472 = vmatprep.subr.bf16.mxu0 0
    %473 = vmatpush1.bf16.msra.mxu0 %v367
    %474 = vmatprep.subr.bf16.mxu0 0
    %475 = vmatpush1.bf16.msra.mxu0 %v368
    %476 = vmatprep.subr.bf16.mxu0 0
    %477 = vmatpush1.bf16.msra.mxu0 %v369
    %478 = vmatprep.subr.bf16.mxu0 0
    %479 = vmatpush1.bf16.msra.mxu0 %v370
    %480 = vmatprep.subr.bf16.mxu0 0
    %481 = vmatpush1.bf16.msra.mxu0 %v371
    %482 = vmatprep.subr.bf16.mxu0 0
    %483 = vmatpush1.bf16.msra.mxu0 %v372
    %484 = vmatprep.subr.bf16.mxu0 0
    %485 = vmatpush1.bf16.msra.mxu0 %v373
    %486 = vmatprep.subr.bf16.mxu0 0
    %487 = vmatpush1.bf16.msra.mxu0 %v374
    %488 = vmatprep.subr.bf16.mxu0 0
    %489 = vmatpush1.bf16.msra.mxu0 %v375
    %490 = vmatprep.subr.bf16.mxu0 0
    %491 = vmatpush1.bf16.msra.mxu0 %v376
    %492 = vmatprep.subr.bf16.mxu0 0
    %493 = vmatpush1.bf16.msra.mxu0 %v377
    %494 = vmatprep.subr.bf16.mxu0 0
    %495 = vmatpush1.bf16.msra.mxu0 %v378
    %496 = vmatprep.subr.bf16.mxu0 0
    %497 = vmatpush1.bf16.msra.mxu0 %v379
    %498 = vmatprep.mubr.bf16.mxu0 %v57
    %499 = vmatmul.mubr.bf16.gmra.mrb[0].mxu0 %v56
    %v500 = vpop.f32.mrb[0].mxu0
    %v501 = vadd.f32 %v166, %v500
    %v502 = vpop.f32.mrb[0].mxu0
    %v503 = vpop.f32.mrb[0].mxu0
    %v504 = vpop.f32.mrb[0].mxu0
    %505 = vdwg.mxu0
    %506 = vmatprep.subr.bf16.mxu0 0
    %507 = vmatpush1.bf16.msra.mxu0 %v380
    %508 = vmatprep.subr.bf16.mxu0 0
    %509 = vmatpush1.bf16.msra.mxu0 %v381
    %510 = vmatprep.subr.bf16.mxu0 0
    %511 = vmatpush1.bf16.msra.mxu0 %v382
    %512 = vmatprep.subr.bf16.mxu0 0
    %513 = vmatpush1.bf16.msra.mxu0 %v383
    %514 = vmatprep.subr.bf16.mxu0 0
    %515 = vmatpush1.bf16.msra.mxu0 %v384
    %516 = vmatprep.subr.bf16.mxu0 0
    %517 = vmatpush1.bf16.msra.mxu0 %v385
    %518 = vmatprep.subr.bf16.mxu0 0
    %519 = vmatpush1.bf16.msra.mxu0 %v386
    %520 = vmatprep.subr.bf16.mxu0 0
    %521 = vmatpush1.bf16.msra.mxu0 %v387
    %522 = vmatprep.subr.bf16.mxu0 0
    %523 = vmatpush1.bf16.msra.mxu0 %v388
    %524 = vmatprep.subr.bf16.mxu0 0
    %525 = vmatpush1.bf16.msra.mxu0 %v389
    %526 = vmatprep.subr.bf16.mxu0 0
    %527 = vmatpush1.bf16.msra.mxu0 %v390
    %528 = vmatprep.subr.bf16.mxu0 0
    %529 = vmatpush1.bf16.msra.mxu0 %v391
    %530 = vmatprep.subr.bf16.mxu0 0
    %531 = vmatpush1.bf16.msra.mxu0 %v392
    %532 = vmatprep.subr.bf16.mxu0 0
    %533 = vmatpush1.bf16.msra.mxu0 %v393
    %534 = vmatprep.subr.bf16.mxu0 0
    %535 = vmatpush1.bf16.msra.mxu0 %v394
    %536 = vmatprep.subr.bf16.mxu0 0
    %537 = vmatpush1.bf16.msra.mxu0 %v395
    %538 = vmatprep.mubr.bf16.mxu0 %v59
    %539 = vmatmul.mubr.bf16.gmra.mrb[0].mxu0 %v58
    %v540 = vpop.f32.mrb[0].mxu0
    %v541 = vadd.f32 %v501, %v540
    %v542 = vpop.f32.mrb[0].mxu0
    %v543 = vpop.f32.mrb[0].mxu0
    %v544 = vpop.f32.mrb[0].mxu0
    %545 = vdwg.mxu0
    %546 = vmatprep.subr.bf16.mxu0 0
    %547 = vmatpush1.bf16.msra.mxu0 %v396
    %548 = vmatprep.subr.bf16.mxu0 0
    %549 = vmatpush1.bf16.msra.mxu0 %v397
    %550 = vmatprep.subr.bf16.mxu0 0
    %551 = vmatpush1.bf16.msra.mxu0 %v398
    %552 = vmatprep.subr.bf16.mxu0 0
    %553 = vmatpush1.bf16.msra.mxu0 %v399
    %554 = vmatprep.subr.bf16.mxu0 0
    %555 = vmatpush1.bf16.msra.mxu0 %v400
    %556 = vmatprep.subr.bf16.mxu0 0
    %557 = vmatpush1.bf16.msra.mxu0 %v401
    %558 = vmatprep.subr.bf16.mxu0 0
    %559 = vmatpush1.bf16.msra.mxu0 %v402
    %560 = vmatprep.subr.bf16.mxu0 0
    %561 = vmatpush1.bf16.msra.mxu0 %v403
    %562 = vmatprep.subr.bf16.mxu0 0
    %563 = vmatpush1.bf16.msra.mxu0 %v404
    %564 = vmatprep.subr.bf16.mxu0 0
    %565 = vmatpush1.bf16.msra.mxu0 %v405
    %566 = vmatprep.subr.bf16.mxu0 0
    %567 = vmatpush1.bf16.msra.mxu0 %v406
    %568 = vmatprep.subr.bf16.mxu0 0
    %569 = vmatpush1.bf16.msra.mxu0 %v407
    %570 = vmatprep.subr.bf16.mxu0 0
    %571 = vmatpush1.bf16.msra.mxu0 %v408
    %572 = vmatprep.subr.bf16.mxu0 0
    %573 = vmatpush1.bf16.msra.mxu0 %v409
    %574 = vmatprep.subr.bf16.mxu0 0
    %575 = vmatpush1.bf16.msra.mxu0 %v410
    %576 = vmatprep.subr.bf16.mxu0 0
    %577 = vmatpush1.bf16.msra.mxu0 %v411
    %578 = vmatprep.mubr.bf16.mxu0 %v61
    %579 = vmatmul.mubr.bf16.gmra.mrb[0].mxu0 %v60
    %v580 = vpop.f32.mrb[0].mxu0
    %v581 = vadd.f32 %v541, %v580
    %v582 = vpop.f32.mrb[0].mxu0
    %v583 = vpop.f32.mrb[0].mxu0
    %v584 = vpop.f32.mrb[0].mxu0
    %585 = vdwg.mxu0
    %586 = vmatprep.subr.bf16.mxu0 0
    %587 = vmatpush1.bf16.msra.mxu0 %v412
    %588 = vmatprep.subr.bf16.mxu0 0
    %589 = vmatpush1.bf16.msra.mxu0 0
    %590 = vmatprep.subr.bf16.mxu0 0
    %591 = vmatpush1.bf16.msra.mxu0 0
    %592 = vmatprep.subr.bf16.mxu0 0
    %593 = vmatpush1.bf16.msra.mxu0 0
    %594 = vmatprep.subr.bf16.mxu0 0
    %595 = vmatpush1.bf16.msra.mxu0 0
    %596 = vmatprep.subr.bf16.mxu0 0
    %597 = vmatpush1.bf16.msra.mxu0 0
    %598 = vmatprep.subr.bf16.mxu0 0
    %599 = vmatpush1.bf16.msra.mxu0 0
    %600 = vmatprep.subr.bf16.mxu0 0
    %601 = vmatpush1.bf16.msra.mxu0 0
    %602 = vmatprep.subr.bf16.mxu0 0
    %603 = vmatpush1.bf16.msra.mxu0 0
    %604 = vmatprep.subr.bf16.mxu0 0
    %605 = vmatpush1.bf16.msra.mxu0 0
    %606 = vmatprep.subr.bf16.mxu0 0
    %607 = vmatpush1.bf16.msra.mxu0 0
    %608 = vmatprep.subr.bf16.mxu0 0
    %609 = vmatpush1.bf16.msra.mxu0 0
    %610 = vmatprep.subr.bf16.mxu0 0
    %611 = vmatpush1.bf16.msra.mxu0 0
    %612 = vmatprep.subr.bf16.mxu0 0
    %613 = vmatpush1.bf16.msra.mxu0 0
    %614 = vmatprep.subr.bf16.mxu0 0
    %615 = vmatpush1.bf16.msra.mxu0 0
    %616 = vmatprep.subr.bf16.mxu0 0
    %617 = vmatpush1.bf16.msra.mxu0 0
    %618 = vmatprep.mubr.bf16.mxu0 0
    %619 = vmatmul.mubr.bf16.gmra.mrb[0].mxu0 %v464
    %v620 = vpop.f32.mrb[0].mxu0
    %v621 = vadd.f32 %v581, %v620
    %v622 = vpop.f32.mrb[0].mxu0
    %v623 = vpop.f32.mrb[0].mxu0
    %v624 = vpop.f32.mrb[0].mxu0
    %625 = vdwg.mxu0
    %vm626 = vcmp.gt.f32.partialorder %v621, 0.0
    %v627 = vmul.f32 %v621, 0.01
    %v628 = vsel %vm626, %v621, %v627
    %v629 = vld [vmem:[%s3] sm:$0x1]
    %v631 = vlaneseq
    %v632 = vshrl.u32 %v631, 7
    %v633 = vsub.s32 0, %v632
    %v634 = vrot.slane %v629, %v633
    %v636 = vmul.f32 %v628, %v634
    %637 = vadd.xlane.f32.xlu0 %v636
    %v638 = vpop.xlane.xlu0 %637
    %v639 = vld [vmem:[#allocation2] sm:$0x1]
    %v641 = vlaneseq
    %v642 = vshrl.u32 %v641, 7
    %v643 = vsub.s32 0, %v642
    %v644 = vrot.slane %v639, %v643
    %v646 = vadd.f32 %v638, %v644
    %v647 = vsub.f32 0.0, %v646
    %v648 = vmul.f32 %v647, 1.442695
    %v649 = vpow.pop %v648
    %v650 = vadd.f32 %v649, 1.0
    %v651 = vrcp.pop %v650
    %vm652 = vcmask 7168
    %653 = vst.msk [vmem:[%s5] sm:$0xff] %vm652, %v651
    // Predicated region
    $region30: #{tpu_custom_call.1} parent=1 // pred_check
      _
    $region31: #{tpu_custom_call.1} parent=1 // pred_check_branch
      %655 = sbr.rel (0) target = $region33
    $region32: #{tpu_custom_call.1} parent=1 // pred_region
      _
    $region33: #{tpu_custom_call.1} parent=1 // pred_fallthru
      _
    // Predicated region
    $region34: #{tpu_custom_call.1} parent=1 // pred_check
      _
    $region35: #{tpu_custom_call.1} parent=1 // pred_check_branch
      %657 = sbr.rel (0) target = $region37
    $region36: #{tpu_custom_call.1} parent=1 // pred_region
      _
    $region37: #{tpu_custom_call.1} parent=1 // pred_fallthru
      _
    %658 = vsyncpa [#allocation4], 1
    %659 = vsyncpa [#allocation6], 1

</llo_original>
